<compile_context>
chip_gen: v7x
topology: tpu7x:2x2x1
jax: 0.10.0
libtpu: 0.0.40
codegen_flags: <defaults>
</compile_context>

<pallas_src>
import jax
import jax.numpy as jnp
from jax.experimental import pallas as pl
from jax.experimental.pallas import tpu as pltpu


def _gcn_kernel(text_ref, adj_ref, w_ref, b_ref, out_ref):
    # text_ref: (N, Fin)   bf16, resident per batch
    # adj_ref:  (tm, N)    f32,  streaming row slab
    # w_ref:    (Fin, Fp)  bf16, resident (Fp = Fout padded to multiple of 128)
    # b_ref:    (1, Fp)    f32,  resident
    # out_ref:  (tm, Fp)   f32
    adj = adj_ref[...]                                              # f32

    # denom = sum over the last axis of adj + 1, in f32 from the original-
    # precision adjacency (matches torch.sum(adj, dim=2, keepdim=True) + 1).
    denom = jnp.sum(adj, axis=-1, keepdims=True) + 1.0              # (tm, 1)
    inv_denom = pl.reciprocal(denom, approx=True)                   # EUP slot

    # Reassociated: (adj @ text) @ W  ==  adj @ (text @ W).
    # bf16 MXU operands, f32 accumulation.
    agg = jnp.dot(adj.astype(jnp.bfloat16), text_ref[...],
                  preferred_element_type=jnp.float32)               # (tm, Fin)
    out = jnp.dot(agg.astype(jnp.bfloat16), w_ref[...],
                  preferred_element_type=jnp.float32)               # (tm, Fp)

    out_ref[...] = (out * inv_denom + b_ref[...]).astype(out_ref.dtype)


def _round_up(x, m):
    return (x + m - 1) // m * m


def _choose_row_tile(n_rows, row_bytes, budget_bytes, max_tile=1024):
    """Largest multiple-of-8 divisor of n_rows (capped at max_tile) whose
    double-buffered streaming blocks (adj row slab + out row slab) fit
    `budget_bytes`."""
    cands = [d for d in range(8, n_rows + 1, 8) if n_rows % d == 0]
    if not cands:
        return n_rows        # n_rows not a multiple of 8 -> full-extent block
    fitting = [d for d in cands
               if d <= max_tile and 2 * d * row_bytes <= budget_bytes]
    return max(fitting) if fitting else min(cands)


def graph_convolution(text, adj, weight, bias=None):
    """Pallas GCN layer. text: (B, N, Fin), adj: (B, N, N) -> (B, N, Fout) f32."""
    B, N, Fin = text.shape
    Fout = weight.shape[1]
    assert adj.shape == (B, N, N)
    assert weight.shape == (Fin, Fout)

    # torch `text.to(torch.float32)` then bf16 for the MXU operand.
    text_bf = text.astype(jnp.float32).astype(jnp.bfloat16)
    adj = adj.astype(jnp.float32)          # kept f32 for the exact denominator

    # Lane-dense output: pad Fout up to a multiple of 128 (unmasked stores).
    Fp = _round_up(Fout, 128)
    w_bf = weight.astype(jnp.float32).astype(jnp.bfloat16)
    if Fp != Fout:
        w_bf = jnp.pad(w_bf, ((0, 0), (0, Fp - Fout)))
    if bias is None:
        # bias=False path: zero bias row (one free VPU add in the kernel).
        b_pad = jnp.zeros((1, Fp), jnp.float32)
    else:
        b_pad = bias.reshape(1, Fout).astype(jnp.float32)
        if Fp != Fout:
            b_pad = jnp.pad(b_pad, ((0, 0), (0, Fp - Fout)))

    # Resident blocks (conservatively counted double-buffered):
    #   text (N, Fin) bf16 + weight (Fin, Fp) bf16 + bias (1, Fp) f32.
    resident_bytes = 2 * (N * Fin * 2 + Fin * Fp * 2 + Fp * 4)
    # Budget safe on v7x (64 MiB physical VMEM) as well as v5e/v6e (128 MiB).
    vmem_cap = 48 << 20
    stream_budget = max(vmem_cap - resident_bytes - (4 << 20), 4 << 20)
    # TODO(synk): for very large N the per-batch resident text (N, Fin) should
    # itself be tiled along the contraction axis with an accumulator.

    # Streaming per output row: adj row (N f32) + out row (Fp f32).
    streaming_row_bytes = 4 * (N + Fp)
    tm = _choose_row_tile(N, streaming_row_bytes, stream_budget)
    n_row_tiles = pl.cdiv(N, tm)

    streaming_bytes = 2 * tm * streaming_row_bytes
    vmem_limit = max(32 << 20, streaming_bytes + resident_bytes + (8 << 20))
    vmem_limit = min(vmem_limit, vmem_cap)

    grid_spec = pltpu.PrefetchScalarGridSpec(
        num_scalar_prefetch=0,
        grid=(B, n_row_tiles),
        in_specs=[
            # text: resident per batch (re-DMA'd only when b changes).
            pl.BlockSpec((pl.Squeezed(), N, Fin), lambda b, i: (b, 0, 0)),
            # adj: streaming row slab (the HBM-bandwidth-dominant operand).
            pl.BlockSpec((pl.Squeezed(), tm, N), lambda b, i: (b, i, 0)),
            # weight / bias: constant index map -> DMA'd once, fully resident.
            pl.BlockSpec((Fin, Fp), lambda b, i: (0, 0)),
            pl.BlockSpec((1, Fp), lambda b, i: (0, 0)),
        ],
        out_specs=pl.BlockSpec((pl.Squeezed(), tm, Fp), lambda b, i: (b, i, 0)),
    )

    out = pl.pallas_call(
        _gcn_kernel,
        out_shape=jax.ShapeDtypeStruct((B, N, Fp), jnp.float32),
        grid_spec=grid_spec,
        compiler_params=pltpu.CompilerParams(
            dimension_semantics=("parallel", "parallel"),
            vmem_limit_bytes=int(vmem_limit),
        ),
    )(text_bf, adj, w_bf, b_pad)

    if Fp != Fout:
        out = out[..., :Fout]
    return out


def graph_convolution_ref(text, adj, weight, bias):
    text = text.astype(jnp.float32)
    hidden = jnp.matmul(text, weight)
    denom = jnp.sum(adj, axis=2, keepdims=True) + 1.0
    out = jnp.matmul(adj, hidden) / denom
    if bias is not None:
        out = out + bias
    return out


if __name__ == "__main__":
    # Small shapes consistent with the module: batch=2, nodes=16,
    # in_features=32, out_features=32.
    B, N, Fin, Fout = 2, 16, 32, 32

    key = jax.random.PRNGKey(0)
    k_text, k_adj, k_w, k_b = jax.random.split(key, 4)

    text = jax.random.normal(k_text, (B, N, Fin), dtype=jnp.float32)
    # Non-negative adjacency (soft adjacency), like a typical GCN input.
    adj = jax.nn.softmax(
        jax.random.normal(k_adj, (B, N, N), dtype=jnp.float32), axis=-1)

    # Deterministic parameter init (synthetic; module __init__ only gives shapes).
    weight = jax.random.normal(k_w, (Fin, Fout), dtype=jnp.float32) * 0.1
    bias = jax.random.normal(k_b, (Fout,), dtype=jnp.float32) * 0.1

    out = graph_convolution(text, adj, weight, bias)
    out = jax.block_until_ready(out)

    ref = graph_convolution_ref(text, adj, weight, bias)
    assert out.shape == (B, N, Fout)
    # bf16 MXU operands + approx reciprocal -> compare at bf16-level tolerance.
    assert jnp.allclose(out, ref, atol=1e-2, rtol=1e-2), "mismatch vs reference"

    print("KERNEL_OK")
</pallas_src>

<mosaic_0001>
module attributes {stable_mosaic.version = 11 : i64} {
  func.func @_gcn_kernel(%arg0: i32, %arg1: i32, %arg2: memref<1x16x32xbf16, #tpu.memory_space<vmem>>, %arg3: memref<1x16x16xf32, #tpu.memory_space<vmem>>, %arg4: memref<32x128xbf16, #tpu.memory_space<vmem>>, %arg5: memref<1x128xf32, #tpu.memory_space<vmem>>, %arg6: memref<1x16x128xf32, #tpu.memory_space<vmem>>) attributes {dimension_semantics = [#tpu.dimension_semantics<parallel>, #tpu.dimension_semantics<parallel>], iteration_bounds = array<i64: 2, 1>, scalar_prefetch = 0 : i64, scratch_operands = 0 : i64, tpu.core_type = #tpu.core_type<tc>, window_params = [{transform_indices = @transform_0, window_bounds = array<i64: 1, 16, 32>}, {transform_indices = @transform_1, window_bounds = array<i64: 1, 16, 16>}, {pipeline_mode = #tpu.pipeline_mode<synchronous>, transform_indices = @transform_2, window_bounds = array<i64: 32, 128>}, {pipeline_mode = #tpu.pipeline_mode<synchronous>, transform_indices = @transform_3, window_bounds = array<i64: 1, 128>}, {transform_indices = @transform_4, window_bounds = array<i64: 1, 16, 128>}]} {
    %c0 = arith.constant 0 : index
    %c0_0 = arith.constant 0 : index
    %c0_1 = arith.constant 0 : index
    %0 = vector.load %arg3[%c0, %c0_0, %c0_1] : memref<1x16x16xf32, #tpu.memory_space<vmem>>, vector<1x16x16xf32>
    %1 = vector.shape_cast %0 : vector<1x16x16xf32> to vector<16x16xf32>
    %cst = arith.constant dense<0.000000e+00> : vector<16xf32>
    %2 = vector.multi_reduction <add>, %1, %cst [1] : vector<16x16xf32> to vector<16xf32>
    %3 = vector.shape_cast %2 : vector<16xf32> to vector<16x1xf32>
    %cst_2 = arith.constant 1.000000e+00 : f32
    %4 = vector.broadcast %cst_2 : f32 to vector<16x1xf32>
    %5 = arith.addf %3, %4 : vector<16x1xf32>
    %6 = tpu.reciprocal %5 {approx = true} : vector<16x1xf32> -> vector<16x1xf32>
    %7 = arith.truncf %1 : vector<16x16xf32> to vector<16x16xbf16>
    %c0_3 = arith.constant 0 : index
    %c0_4 = arith.constant 0 : index
    %c0_5 = arith.constant 0 : index
    %8 = vector.load %arg2[%c0_3, %c0_4, %c0_5] : memref<1x16x32xbf16, #tpu.memory_space<vmem>>, vector<1x16x32xbf16>
    %9 = vector.shape_cast %8 : vector<1x16x32xbf16> to vector<16x32xbf16>
    %cst_6 = arith.constant dense<0.000000e+00> : vector<16x32xf32>
    %10 = tpu.matmul %7, %9, %cst_6 {dimension_numbers = #tpu.dot_dimension_numbers<[1], [0], [0], [1], [0, 0, 1, 1], [], []>} : vector<16x16xbf16>, vector<16x32xbf16>, vector<16x32xf32> -> vector<16x32xf32>
    %11 = arith.truncf %10 : vector<16x32xf32> to vector<16x32xbf16>
    %c0_7 = arith.constant 0 : index
    %c0_8 = arith.constant 0 : index
    %12 = vector.load %arg4[%c0_7, %c0_8] : memref<32x128xbf16, #tpu.memory_space<vmem>>, vector<32x128xbf16>
    %cst_9 = arith.constant dense<0.000000e+00> : vector<16x128xf32>
    %13 = tpu.matmul %11, %12, %cst_9 {dimension_numbers = #tpu.dot_dimension_numbers<[1], [0], [0], [1], [0, 0, 1, 1], [], []>} : vector<16x32xbf16>, vector<32x128xbf16>, vector<16x128xf32> -> vector<16x128xf32>
    %14 = vector.broadcast %6 : vector<16x1xf32> to vector<16x128xf32>
    %15 = arith.mulf %13, %14 : vector<16x128xf32>
    %c0_10 = arith.constant 0 : index
    %c0_11 = arith.constant 0 : index
    %16 = vector.load %arg5[%c0_10, %c0_11] : memref<1x128xf32, #tpu.memory_space<vmem>>, vector<1x128xf32>
    %17 = vector.broadcast %16 : vector<1x128xf32> to vector<16x128xf32>
    %18 = arith.addf %15, %17 : vector<16x128xf32>
    %c0_12 = arith.constant 0 : index
    %c0_13 = arith.constant 0 : index
    %c0_14 = arith.constant 0 : index
    %19 = vector.load %arg6[%c0_12, %c0_13, %c0_14] : memref<1x16x128xf32, #tpu.memory_space<vmem>>, vector<1x16x128xf32>
    %20 = vector.shape_cast %19 : vector<1x16x128xf32> to vector<16x128xf32>
    %21 = vector.shape_cast %18 : vector<16x128xf32> to vector<1x16x128xf32>
    tpu.vector_store %arg6[%c0_12, %c0_13, %c0_14], %21 {strides = array<i32>} : memref<1x16x128xf32, #tpu.memory_space<vmem>>, vector<1x16x128xf32>,
    return
  }
  func.func @transform_0(%arg0: i32, %arg1: i32) -> (i32, i32, i32) {
    %c0_i32 = arith.constant 0 : i32
    %c0_i32_0 = arith.constant 0 : i32
    %c0_i32_1 = arith.constant 0 : i32
    return %arg0, %c0_i32, %c0_i32_0 : i32, i32, i32
  }
  func.func @transform_1(%arg0: i32, %arg1: i32) -> (i32, i32, i32) {
    %c0_i32 = arith.constant 0 : i32
    %c0_i32_0 = arith.constant 0 : i32
    return %arg0, %arg1, %c0_i32 : i32, i32, i32
  }
  func.func @transform_2(%arg0: i32, %arg1: i32) -> (i32, i32) {
    %c0_i32 = arith.constant 0 : i32
    %c0_i32_0 = arith.constant 0 : i32
    %c0_i32_1 = arith.constant 0 : i32
    return %c0_i32, %c0_i32_0 : i32, i32
  }
  func.func @transform_3(%arg0: i32, %arg1: i32) -> (i32, i32) {
    %c0_i32 = arith.constant 0 : i32
    %c0_i32_0 = arith.constant 0 : i32
    %c0_i32_1 = arith.constant 0 : i32
    return %c0_i32, %c0_i32_0 : i32, i32
  }
  func.func @transform_4(%arg0: i32, %arg1: i32) -> (i32, i32, i32) {
    %c0_i32 = arith.constant 0 : i32
    %c0_i32_0 = arith.constant 0 : i32
    return %arg0, %arg1, %c0_i32 : i32, i32, i32
  }
}

</mosaic_0001>

<llo_original>
// kernel: tpu_custom_call.1
$region0: #{tpu_custom_call.1}
  #allocation0 [shape = 'u32[]', space=smem, size = 0x4, offset = 0x4, fixed_abs, tag = 'smem constant byte address 0x4 - core index']
  #allocation1 [shape = 'u32[144,128]{1,0:T(1,128)}', space=vmem, size = 0x12000, scoped, tag = 'internal scratch']
  %s0 = inlined_call_operand.hbm [shape: bf16[2,16,32], index: 0, kind: input, shape index: {}]
  %s1 = inlined_call_operand.hbm [shape: f32[2,16,16], index: 1, kind: input, shape index: {}]
  %s2 = inlined_call_operand.hbm [shape: bf16[32,128], index: 2, kind: input, shape index: {}]
  %s3 = inlined_call_operand.vmem [shape: f32[1,128], index: 3, kind: input, shape index: {}]
  %s4 = inlined_call_operand.hbm [shape: f32[2,16,128], index: 4, kind: output, shape index: {}]
  %s5 = sld [smem:[#allocation0]]
  $region61: #{tpu_custom_call.1} parent=0
    _
  %s7 = ssub.s32 1, %s5
  %s8 = scalar_select 0, %s7, %s5
  $region1: #{tpu_custom_call.1} parent=0
    #allocation2 [shape = 'u8[8192]{0}', space=vmem, size = 0x2000, scoped, tag = 'input window, operand 0']
    #allocation3 [shape = 's32[2]{0}', space=sflag, size = 0x8, scoped, tag = 'scoped memory for tpu_custom_call.1']
    #allocation4 [shape = 's32[2]{0}', space=sflag, size = 0x8, scoped, tag = 'scoped memory for tpu_custom_call.1']
    #allocation5 [shape = 'u8[16384]{0}', space=vmem, size = 0x4000, scoped, tag = 'input window, operand 1']
    #allocation6 [shape = 's32[2]{0}', space=sflag, size = 0x8, scoped, tag = 'scoped memory for tpu_custom_call.1']
    #allocation7 [shape = 'u8[8192]{0}', space=vmem, size = 0x2000, scoped, tag = 'input window, operand 2, single buffered']
    #allocation8 [shape = 'u8[16384]{0}', space=vmem, size = 0x4000, scoped, tag = 'output window, operand 0']
    %9 = vsyncpa [#allocation3], 0
    %s10 = scalar_lea.sflag [#allocation3], 1
    %11 = vsyncpa %s10, 0
    %12 = vsyncpa [#allocation6], 0
    %s13 = scalar_lea.sflag [#allocation6], 1
    %14 = vsyncpa %s13, 0
    %15 = vsyncpa [#allocation4], 0
    %s16 = scalar_lea.sflag [#allocation4], 1
    %17 = vsyncpa %s16, 0
    loop: start=0, step=1, limit=4
    $region2: #{tpu_custom_call.1} parent=1 // loop_pre_header
      _
    $region3: #{tpu_custom_call.1} parent=1 // loop_header
      %s19 = sphi 0, %s23
      %p20 = scmp.ge.s32.totalorder %s19, 4
      %s26 = sphi 0, %s38
      %s27 = sphi 0, %s34
      %s28 = sphi 0, %s26
      %s29 = sphi 0, %s27
      %s30 = sphi 0, %s28
      %s31 = sphi 0, %s29
      %s41 = sphi 0, %s43
      %s44 = sphi 0, %s41
      %s45 = sphi 0, %s44
      %s61 = sphi 0, %s45
      %s69 = sphi 0, %s71
      %s72 = sphi 0, %s69
      %s73 = sphi 0, %s72
      %s89 = sphi 0, %s73
      %s93 = sphi 0, %s93
      %s95 = sphi 0, %s93
      %s96 = sphi 0, %s95
      %s110 = sphi 0, %s96
      %s114 = sphi 0, %s114
      %s116 = sphi 0, %s114
      %s117 = sphi 0, %s116
      %s131 = sphi 0, %s117
      %s139 = sphi 0, %s141
      %s142 = sphi 0, %s139
      %s143 = sphi 0, %s142
      %s159 = sphi 0, %s143
    $region4: #{tpu_custom_call.1} parent=1 // loop_header_branch
      %22 = sbr.rel (%p20) target = $region8
    $region5: #{tpu_custom_call.1} parent=1 // loop_body
      %s24 = ssub.s32 %s19, 1
      %s25 = ssub.s32 %s19, 2
      %s32 = sadd.s32 1, %s27
      %p33 = scmp.ge.s32.totalorder %s32, 1
      %s34 = scalar_select %p33, 0, %s32
      %s35 = sadd.s32 1, %s26
      %s36 = scalar_select %p33, %s35, %s26
      %p37 = scmp.ge.s32.totalorder %s36, 2
      %s38 = scalar_select %p37, 0, %s36
      %s39 = ssub.s32 %s26, %s38
      %p40 = scmp.eq.s32.totalorder %s39, 0
      %s42 = sadd.s32 %s41, 1
      %s43 = scalar_select %p40, %s41, %s42
      %p46 = pneg %p40
      %p47 = scmp.eq.s32.totalorder %s19, 1
      %p48 = por %p46, %p47
      %p49 = scmp.ne.s32.totalorder %s41, %s44
      %p50 = scmp.eq.s32.totalorder %s19, 0
      %p51 = por %p49, %p50
      %p52 = scmp.ne.s32.totalorder %s41, %s44
      %p53 = scmp.eq.s32.totalorder %s24, 1
      %p54 = por %p52, %p53
      %p55 = scmp.ne.s32.totalorder %s44, %s45
      %p56 = scmp.eq.s32.totalorder %s24, 0
      %p57 = por %p55, %p56
      %p58 = scmp.ne.s32.totalorder %s44, %s45
      %p59 = scmp.eq.s32.totalorder %s25, 1
      %p60 = por %p58, %p59
      %p62 = scmp.ne.s32.totalorder %s45, %s61
      %p63 = scmp.eq.s32.totalorder %s25, 0
      %p64 = por %p62, %p63
      %s65 = ssub.s32 %s26, %s38
      %s66 = ssub.s32 %s27, %s34
      %s67 = sor.u32 %s65, %s66
      %p68 = scmp.eq.s32.totalorder %s67, 0
      %s70 = sadd.s32 %s69, 1
      %s71 = scalar_select %p68, %s69, %s70
      %p74 = pneg %p68
      %p75 = scmp.eq.s32.totalorder %s19, 1
      %p76 = por %p74, %p75
      %p77 = scmp.ne.s32.totalorder %s69, %s72
      %p78 = scmp.eq.s32.totalorder %s19, 0
      %p79 = por %p77, %p78
      %p80 = scmp.ne.s32.totalorder %s69, %s72
      %p81 = scmp.eq.s32.totalorder %s24, 1
      %p82 = por %p80, %p81
      %p83 = scmp.ne.s32.totalorder %s72, %s73
      %p84 = scmp.eq.s32.totalorder %s24, 0
      %p85 = por %p83, %p84
      %p86 = scmp.ne.s32.totalorder %s72, %s73
      %p87 = scmp.eq.s32.totalorder %s25, 1
      %p88 = por %p86, %p87
      %p90 = scmp.ne.s32.totalorder %s73, %s89
      %p91 = scmp.eq.s32.totalorder %s25, 0
      %p92 = por %p90, %p91
      %s94 = sadd.s32 %s93, 1
      %p97 = scmp.eq.s32.totalorder %s19, 1
      %p98 = scmp.ne.s32.totalorder %s93, %s95
      %p99 = scmp.eq.s32.totalorder %s19, 0
      %p100 = por %p98, %p99
      %p101 = scmp.ne.s32.totalorder %s93, %s95
      %p102 = scmp.eq.s32.totalorder %s24, 1
      %p103 = por %p101, %p102
      %p104 = scmp.ne.s32.totalorder %s95, %s96
      %p105 = scmp.eq.s32.totalorder %s24, 0
      %p106 = por %p104, %p105
      %p107 = scmp.ne.s32.totalorder %s95, %s96
      %p108 = scmp.eq.s32.totalorder %s25, 1
      %p109 = por %p107, %p108
      %p111 = scmp.ne.s32.totalorder %s96, %s110
      %p112 = scmp.eq.s32.totalorder %s25, 0
      %p113 = por %p111, %p112
      %s115 = sadd.s32 %s114, 1
      %p118 = scmp.eq.s32.totalorder %s19, 1
      %p119 = scmp.ne.s32.totalorder %s114, %s116
      %p120 = scmp.eq.s32.totalorder %s19, 0
      %p121 = por %p119, %p120
      %p122 = scmp.ne.s32.totalorder %s114, %s116
      %p123 = scmp.eq.s32.totalorder %s24, 1
      %p124 = por %p122, %p123
      %p125 = scmp.ne.s32.totalorder %s116, %s117
      %p126 = scmp.eq.s32.totalorder %s24, 0
      %p127 = por %p125, %p126
      %p128 = scmp.ne.s32.totalorder %s116, %s117
      %p129 = scmp.eq.s32.totalorder %s25, 1
      %p130 = por %p128, %p129
      %p132 = scmp.ne.s32.totalorder %s117, %s131
      %p133 = scmp.eq.s32.totalorder %s25, 0
      %p134 = por %p132, %p133
      %s135 = ssub.s32 %s26, %s38
      %s136 = ssub.s32 %s27, %s34
      %s137 = sor.u32 %s135, %s136
      %p138 = scmp.eq.s32.totalorder %s137, 0
      %s140 = sadd.s32 %s139, 1
      %s141 = scalar_select %p138, %s139, %s140
      %p144 = pneg %p138
      %p145 = scmp.eq.s32.totalorder %s19, 1
      %p146 = por %p144, %p145
      %p147 = scmp.ne.s32.totalorder %s139, %s142
      %p148 = scmp.eq.s32.totalorder %s19, 0
      %p149 = por %p147, %p148
      %p150 = scmp.ne.s32.totalorder %s139, %s142
      %p151 = scmp.eq.s32.totalorder %s24, 1
      %p152 = por %p150, %p151
      %p153 = scmp.ne.s32.totalorder %s142, %s143
      %p154 = scmp.eq.s32.totalorder %s24, 0
      %p155 = por %p153, %p154
      %p156 = scmp.ne.s32.totalorder %s142, %s143
      %p157 = scmp.eq.s32.totalorder %s25, 1
      %p158 = por %p156, %p157
      %p160 = scmp.ne.s32.totalorder %s143, %s159
      %p161 = scmp.eq.s32.totalorder %s25, 0
      %p162 = por %p160, %p161
      %p163 = scmp.le.s32.totalorder 1, %s19
      %p164 = scmp.lt.s32.totalorder %s19, 3
      %p165 = pnand %p163, %p164
      %p166 = pneg %p165
      // Predicated region
      $region9: #{tpu_custom_call.1} parent=5 // pred_check
        _
      $region10: #{tpu_custom_call.1} parent=5 // pred_check_branch
        %168 = sbr.rel (%p165) target = $region12
      $region11: #{tpu_custom_call.1} parent=5 // pred_region
        %s169 = ssub.s32 %s19, 1
        // Predicated region
        $region13: #{tpu_custom_call.1} parent=11 // pred_check
          %p170 = pneg %p106
        $region14: #{tpu_custom_call.1} parent=11 // pred_check_branch
          %172 = sbr.rel (%p170) target = $region16
        $region15: #{tpu_custom_call.1} parent=11 // pred_region
          %s174 = ssub.s32 256, 256
          %175 = vsyncadd [#allocation6], %s174
          %s176 = sshll.u32 [#allocation7], 4
          %s177 = int_to_ptr.vmem [resolvable:$true] %s176
          %182 = dma.hbm_to_vmem [thread:$0]  %s2, 256, %s177, [#allocation6], 64, 64, 4
        $region16: #{tpu_custom_call.1} parent=11 // pred_fallthru
          _
        // Predicated region
        $region17: #{tpu_custom_call.1} parent=11 // pred_check
          %p183 = pneg %p127
        $region18: #{tpu_custom_call.1} parent=11 // pred_check_branch
          %185 = sbr.rel (%p183) target = $region20
        $region19: #{tpu_custom_call.1} parent=11 // pred_region
          _
        $region20: #{tpu_custom_call.1} parent=11 // pred_fallthru
          _
      $region12: #{tpu_custom_call.1} parent=5 // pred_fallthru
        _
      %p186 = scmp.lt.s32.totalorder %s19, 2
      // Predicated region
      $region21: #{tpu_custom_call.1} parent=5 // pred_check
        %p187 = pneg %p186
      $region22: #{tpu_custom_call.1} parent=5 // pred_check_branch
        %189 = sbr.rel (%p187) target = $region24
      $region23: #{tpu_custom_call.1} parent=5 // pred_region
        // Predicated region
        $region25: #{tpu_custom_call.1} parent=23 // pred_check
          %p190 = pneg %p51
        $region26: #{tpu_custom_call.1} parent=23 // pred_check_branch
          %192 = sbr.rel (%p190) target = $region28
        $region27: #{tpu_custom_call.1} parent=23 // pred_region
          %s193 = sand.u32 %s41, 1
          %s194 = scalar_lea.sflag [#allocation3], %s193
          %s195 = sand.u32 %s41, 1
          %s196 = smul.addr %s195, 8
          %s197 = scalar_lea.vmem [#allocation2], %s196
          %s199 = ssub.s32 128, 128
          %200 = vsyncadd %s194, %s199
          %s201 = smul.addr %s26, 2
          %s202 = smul.addr %s201, 64
          %s203 = scalar_lea.hbm %s0, %s202
          %s204 = sshll.u32 %s197, 4
          %s205 = int_to_ptr.vmem [resolvable:$true] %s204
          %210 = dma.hbm_to_vmem [thread:$0]  %s203, 128, %s205, %s194, 64, 64, 4
        $region28: #{tpu_custom_call.1} parent=23 // pred_fallthru
          _
        // Predicated region
        $region29: #{tpu_custom_call.1} parent=23 // pred_check
          %p211 = pneg %p79
        $region30: #{tpu_custom_call.1} parent=23 // pred_check_branch
          %213 = sbr.rel (%p211) target = $region32
        $region31: #{tpu_custom_call.1} parent=23 // pred_region
          %s214 = sand.u32 %s19, 1
          %s215 = scalar_lea.sflag [#allocation6], %s214
          %s216 = sand.u32 %s69, 1
          %s217 = smul.addr %s216, 16
          %s218 = scalar_lea.vmem [#allocation5], %s217
          %s219 = smul.u32 2, %s27
          %s221 = ssub.s32 256, 256
          %222 = vsyncadd %s215, %s221
          %s223 = smul.addr %s26, 2
          %s224 = sadd.s32 %s219, %s223
          %s225 = smul.addr %s224, 128
          %s226 = scalar_lea.hbm %s1, %s225
          %s227 = sshll.u32 %s218, 4
          %s228 = int_to_ptr.vmem [resolvable:$true] %s227
          %233 = dma.hbm_to_vmem [thread:$0]  %s226, 256, %s228, %s215, 128, 128, 8
        $region32: #{tpu_custom_call.1} parent=23 // pred_fallthru
          _
      $region24: #{tpu_custom_call.1} parent=5 // pred_fallthru
        _
      %p234 = scmp.le.s32.totalorder 1, %s19
      %p235 = scmp.lt.s32.totalorder %s19, 3
      %p236 = pnand %p234, %p235
      %p237 = pneg %p236
      // Predicated region
      $region33: #{tpu_custom_call.1} parent=5 // pred_check
        _
      $region34: #{tpu_custom_call.1} parent=5 // pred_check_branch
        %239 = sbr.rel (%p236) target = $region36
      $region35: #{tpu_custom_call.1} parent=5 // pred_region
        %s240 = ssub.s32 %s19, 1
        %s241 = sand.u32 %s44, 1
        %s242 = scalar_lea.sflag [#allocation3], %s241
        %s243 = sand.u32 %s44, 1
        %s244 = smul.addr %s243, 8
        %s245 = scalar_lea.vmem [#allocation2], %s244
        // Predicated region
        $region37: #{tpu_custom_call.1} parent=35 // pred_check
          %p246 = pneg %p57
        $region38: #{tpu_custom_call.1} parent=35 // pred_check_branch
          %248 = sbr.rel (%p246) target = $region40
        $region39: #{tpu_custom_call.1} parent=35 // pred_region
          %249 = dma.done %s242, 128
        $region40: #{tpu_custom_call.1} parent=35 // pred_fallthru
          _
        %s250 = sand.u32 %s24, 1
        %s251 = scalar_lea.sflag [#allocation6], %s250
        %s252 = sand.u32 %s72, 1
        %s253 = smul.addr %s252, 16
        %s254 = scalar_lea.vmem [#allocation5], %s253
        // Predicated region
        $region41: #{tpu_custom_call.1} parent=35 // pred_check
          %p255 = pneg %p85
        $region42: #{tpu_custom_call.1} parent=35 // pred_check_branch
          %257 = sbr.rel (%p255) target = $region44
        $region43: #{tpu_custom_call.1} parent=35 // pred_region
          %258 = dma.done %s251, 256
        $region44: #{tpu_custom_call.1} parent=35 // pred_fallthru
          _
        // Predicated region
        $region45: #{tpu_custom_call.1} parent=35 // pred_check
          %p259 = pneg %p106
        $region46: #{tpu_custom_call.1} parent=35 // pred_check_branch
          %261 = sbr.rel (%p259) target = $region48
        $region47: #{tpu_custom_call.1} parent=35 // pred_region
          %262 = dma.done [#allocation6], 256
        $region48: #{tpu_custom_call.1} parent=35 // pred_fallthru
          _
        %s263 = sand.u32 %s44, 1
        %s264 = scalar_lea.sflag [#allocation3], %s263
        %s265 = sand.u32 %s44, 1
        %s266 = smul.addr %s265, 8
        %s267 = scalar_lea.vmem [#allocation2], %s266
        %p268 = pneg %p57
        %p269 = pneg %p54
        %s270 = sand.u32 %s24, 1
        %s271 = scalar_lea.sflag [#allocation6], %s270
        %s272 = sand.u32 %s72, 1
        %s273 = smul.addr %s272, 16
        %s274 = scalar_lea.vmem [#allocation5], %s273
        %p275 = pneg %p85
        %p276 = pneg %p82
        %p277 = pneg %p106
        %p278 = pneg %p103
        %p279 = pneg %p127
        %p280 = pneg %p124
        %p281 = pneg %p155
        %p282 = pneg %p152
        %s283 = sand.u32 %s142, 1
        %s284 = scalar_lea.sflag [#allocation4], %s283
        %s285 = sand.u32 %s142, 1
        %s286 = smul.addr %s285, 16
        %s287 = scalar_lea.vmem [#allocation8], %s286
        %s288 = smul.u32 2, %s29
        %s289 = smul.u32 2, %s29
        %v291 = vld [vmem:[%s254] sm:$0xff]
        %v292 = vld [vmem:[%s254 + $0x8] sm:$0xff]
        %vm293 = vcmask 130048
        %v294 = vsel %vm293, %v291, 0.0
        %295 = vadd.xlane.f32.xlu0 %v294
        %v296 = vpop.xlane.xlu0 %295
        %v297 = vsel %vm293, %v292, 0.0
        %298 = vadd.xlane.f32.xlu0 %v297
        %v299 = vpop.xlane.xlu0 %298
        %v300 = vadd.f32 %v296, 1.0
        %v301 = vadd.f32 %v299, 1.0
        %v302 = vrcp.pop %v300
        %v303 = vrcp.pop %v301
        %v304 = vpack.c.bf16 %v292, %v291
        %v305 = vld [vmem:[%s245] sm:$0xf]
        %v306 = vld [vmem:[%s245 + $0x4] sm:$0xf]
        %v309 = vunpack.c.l.b16 %v305
        %v310 = vunpack.c.l.b16 %v306
        %v311 = vpack.c.b16 %v310, %v309
        %v314 = vsel %vm293, %v304, 0
        %316 = vmatprep.subr.bf16.mxu0 0
        %317 = vmatpush1.bf16.msra.mxu0 %v311
        %318 = vmatprep.subr.bf16.mxu0 0
        %319 = vmatpush1.bf16.msra.mxu0 0
        %320 = vmatprep.subr.bf16.mxu0 0
        %321 = vmatpush1.bf16.msra.mxu0 0
        %322 = vmatprep.subr.bf16.mxu0 0
        %323 = vmatpush1.bf16.msra.mxu0 0
        %324 = vmatprep.subr.bf16.mxu0 0
        %325 = vmatpush1.bf16.msra.mxu0 0
        %326 = vmatprep.subr.bf16.mxu0 0
        %327 = vmatpush1.bf16.msra.mxu0 0
        %328 = vmatprep.subr.bf16.mxu0 0
        %329 = vmatpush1.bf16.msra.mxu0 0
        %330 = vmatprep.subr.bf16.mxu0 0
        %331 = vmatpush1.bf16.msra.mxu0 0
        %332 = vmatprep.subr.bf16.mxu0 0
        %333 = vmatpush1.bf16.msra.mxu0 0
        %334 = vmatprep.subr.bf16.mxu0 0
        %335 = vmatpush1.bf16.msra.mxu0 0
        %336 = vmatprep.subr.bf16.mxu0 0
        %337 = vmatpush1.bf16.msra.mxu0 0
        %338 = vmatprep.subr.bf16.mxu0 0
        %339 = vmatpush1.bf16.msra.mxu0 0
        %340 = vmatprep.subr.bf16.mxu0 0
        %341 = vmatpush1.bf16.msra.mxu0 0
        %342 = vmatprep.subr.bf16.mxu0 0
        %343 = vmatpush1.bf16.msra.mxu0 0
        %344 = vmatprep.subr.bf16.mxu0 0
        %345 = vmatpush1.bf16.msra.mxu0 0
        %346 = vmatprep.subr.bf16.mxu0 0
        %347 = vmatpush1.bf16.msra.mxu0 0
        %348 = vmatprep.mubr.bf16.mxu0 0
        %349 = vmatmul.mubr.bf16.gmra.mrb[0].mxu0 %v314
        %v350 = vpop.f32.mrb[0].mxu0
        %v351 = vadd.f32 0.0, %v350
        %v352 = vpop.f32.mrb[0].mxu0
        %v353 = vpop.f32.mrb[0].mxu0
        %v354 = vadd.f32 0.0, %v353
        %v355 = vpop.f32.mrb[0].mxu0
        %356 = vdwg.mxu0
        %v357 = vpack.c.bf16 %v354, %v351
        %v358 = vld [vmem:[#allocation7] sm:$0xf]
        %v359 = vld [vmem:[#allocation7 + $0x4] sm:$0xf]
        %v360 = vld [vmem:[#allocation7 + $0x8] sm:$0xf]
        %v361 = vld [vmem:[#allocation7 + $0xc] sm:$0xf]
        %v366 = vunpack.c.l.b16 %v358
        %v367 = vunpack.c.l.b16 %v359
        %v368 = vunpack.c.l.b16 %v360
        %v369 = vunpack.c.l.b16 %v361
        %v370 = vpack.c.b16 %v367, %v366
        %v371 = vpack.c.b16 %v369, %v368
        %vm374 = vcmask 261120
        %v376 = vsel %vm374, %v357, 0
        %378 = vmatprep.subr.bf16.mxu0 0
        %379 = vmatpush1.bf16.msra.mxu0 %v370
        %380 = vmatprep.subr.bf16.mxu0 0
        %381 = vmatpush1.bf16.msra.mxu0 %v371
        %382 = vmatprep.subr.bf16.mxu0 0
        %383 = vmatpush1.bf16.msra.mxu0 0
        %384 = vmatprep.subr.bf16.mxu0 0
        %385 = vmatpush1.bf16.msra.mxu0 0
        %386 = vmatprep.subr.bf16.mxu0 0
        %387 = vmatpush1.bf16.msra.mxu0 0
        %388 = vmatprep.subr.bf16.mxu0 0
        %389 = vmatpush1.bf16.msra.mxu0 0
        %390 = vmatprep.subr.bf16.mxu0 0
        %391 = vmatpush1.bf16.msra.mxu0 0
        %392 = vmatprep.subr.bf16.mxu0 0
        %393 = vmatpush1.bf16.msra.mxu0 0
        %394 = vmatprep.subr.bf16.mxu0 0
        %395 = vmatpush1.bf16.msra.mxu0 0
        %396 = vmatprep.subr.bf16.mxu0 0
        %397 = vmatpush1.bf16.msra.mxu0 0
        %398 = vmatprep.subr.bf16.mxu0 0
        %399 = vmatpush1.bf16.msra.mxu0 0
        %400 = vmatprep.subr.bf16.mxu0 0
        %401 = vmatpush1.bf16.msra.mxu0 0
        %402 = vmatprep.subr.bf16.mxu0 0
        %403 = vmatpush1.bf16.msra.mxu0 0
        %404 = vmatprep.subr.bf16.mxu0 0
        %405 = vmatpush1.bf16.msra.mxu0 0
        %406 = vmatprep.subr.bf16.mxu0 0
        %407 = vmatpush1.bf16.msra.mxu0 0
        %408 = vmatprep.subr.bf16.mxu0 0
        %409 = vmatpush1.bf16.msra.mxu0 0
        %410 = vmatprep.mubr.bf16.mxu0 0
        %411 = vmatmul.mubr.bf16.gmra.mrb[0].mxu0 %v376
        %v412 = vpop.f32.mrb[0].mxu0
        %v413 = vadd.f32 0.0, %v412
        %v414 = vpop.f32.mrb[0].mxu0
        %v415 = vpop.f32.mrb[0].mxu0
        %v416 = vadd.f32 0.0, %v415
        %v417 = vpop.f32.mrb[0].mxu0
        %418 = vdwg.mxu0
        %v419 = vmul.f32 %v413, %v302
        %v420 = vmul.f32 %v416, %v303
        %v421 = vld [vmem:[%s3] sm:$0x1]
        %v423 = vlaneseq
        %v424 = vshrl.u32 %v423, 7
        %v425 = vsub.s32 0, %v424
        %v426 = vrot.slane %v421, %v425
        %v428 = vadd.f32 %v419, %v426
        %v429 = vadd.f32 %v420, %v426
        %430 = vst [vmem:[%s287] sm:$0xff] %v428
        %431 = vst [vmem:[%s287 + $0x8] sm:$0xff] %v429
        %s432 = sand.u32 %s142, 1
        %s433 = scalar_lea.sflag [#allocation4], %s432
        %s434 = sand.u32 %s142, 1
        %s435 = smul.addr %s434, 16
        %s436 = scalar_lea.vmem [#allocation8], %s435
        // Predicated region
        $region49: #{tpu_custom_call.1} parent=35 // pred_check
          %p437 = pneg %p152
        $region50: #{tpu_custom_call.1} parent=35 // pred_check_branch
          %439 = sbr.rel (%p437) target = $region52
        $region51: #{tpu_custom_call.1} parent=35 // pred_region
          %s440 = smul.u32 2, %s29
          %s442 = ssub.s32 256, 256
          %443 = vsyncadd %s433, %s442
          %s444 = smul.addr %s28, 2
          %s445 = sadd.s32 %s440, %s444
          %s446 = smul.addr %s445, 128
          %s447 = scalar_lea.hbm %s4, %s446
          %s448 = sshll.u32 %s436, 4
          %s449 = int_to_ptr.vmem [resolvable:$true] %s448
          %454 = dma.vmem_to_hbm [thread:$0]  %s449, 256, %s447, %s433, 128, 128, 8
        $region52: #{tpu_custom_call.1} parent=35 // pred_fallthru
          _
      $region36: #{tpu_custom_call.1} parent=5 // pred_fallthru
        _
      %p455 = scmp.le.s32.totalorder 2, %s19
      // Predicated region
      $region53: #{tpu_custom_call.1} parent=5 // pred_check
        %p456 = pneg %p455
      $region54: #{tpu_custom_call.1} parent=5 // pred_check_branch
        %458 = sbr.rel (%p456) target = $region56
      $region55: #{tpu_custom_call.1} parent=5 // pred_region
        %s459 = ssub.s32 %s19, 2
        // Predicated region
        $region57: #{tpu_custom_call.1} parent=55 // pred_check
          %p460 = pneg %p158
        $region58: #{tpu_custom_call.1} parent=55 // pred_check_branch
          %462 = sbr.rel (%p460) target = $region60
        $region59: #{tpu_custom_call.1} parent=55 // pred_region
          %s463 = sand.u32 %s143, 1
          %s464 = scalar_lea.sflag [#allocation4], %s463
          %s465 = sand.u32 %s143, 1
          %s466 = smul.addr %s465, 16
          %s467 = scalar_lea.vmem [#allocation8], %s466
          %468 = dma.done %s464, 256
        $region60: #{tpu_custom_call.1} parent=55 // pred_fallthru
          _
      $region56: #{tpu_custom_call.1} parent=5 // pred_fallthru
        _
    $region6: #{tpu_custom_call.1} parent=1 // loop_footer
      %s23 = sadd.s32 1, %s19
    $region7: #{tpu_custom_call.1} parent=1 // loop_footer_branch
      %18 = sbr.rel target = $region3
    $region8: #{tpu_custom_call.1} parent=1 // loop_exit
      _
    %469 = vsyncpa [#allocation3], 1
    %s470 = scalar_lea.sflag [#allocation3], 1
    %471 = vsyncpa %s470, 1
    %472 = vsyncpa [#allocation6], 1
    %s473 = scalar_lea.sflag [#allocation6], 1
    %474 = vsyncpa %s473, 1
    %475 = vsyncpa [#allocation4], 1
    %s476 = scalar_lea.sflag [#allocation4], 1
    %477 = vsyncpa %s476, 1

</llo_original>
